<compile_context>
chip_gen: v5e
topology: v5e:2x2
jax: 0.10.0
libtpu: 0.0.40
codegen_flags: <defaults>
</compile_context>

<pallas_src>
import math
from functools import partial

import jax
import jax.numpy as jnp
from jax import lax
from jax.experimental import pallas as pl
from jax.experimental.pallas import tpu as pltpu

_VMEM_LIMIT = 64 * 1024 * 1024  # explicit scoped-VMEM limit (<= physical on v5e/v6e/v7x)


def _round_up(n, m):
    return ((n + m - 1) // m) * m


def _pad_dim(a, axis, size):
    pad = size - a.shape[axis]
    if pad <= 0:
        return a
    widths = [(0, 0)] * a.ndim
    widths[axis] = (0, pad)
    return jnp.pad(a, widths)


# ---------------------------------------------------------------------------
# Phase 1: tiled (M, K) x (K, N) + bias matmul.
# ---------------------------------------------------------------------------
def _matmul_bias_kernel(x_ref, w_ref, b_ref, o_ref, acc_ref):
    k = pl.program_id(2)

    @pl.when(k == 0)
    def _():
        acc_ref[...] = jnp.zeros(acc_ref.shape, acc_ref.dtype)

    acc_ref[...] += jnp.dot(x_ref[...], w_ref[...],
                            preferred_element_type=jnp.float32)

    @pl.when(k == pl.num_programs(2) - 1)
    def _():
        o_ref[...] = acc_ref[...] + b_ref[...]


def matmul_bias(x, w, b, *, bm=1024, bn=512, bk=512):
    """x: (M, K), w: (K, N), b: (1, N) -> (M, N) f32."""
    M, K = x.shape
    N = w.shape[1]
    bm = min(bm, M)
    bn = min(bn, N)
    bk = min(bk, K)
    if K % bk != 0:       # a ragged K tail would accumulate OOB garbage
        bk = K
    grid = (pl.cdiv(M, bm), pl.cdiv(N, bn), K // bk)
    return pl.pallas_call(
        _matmul_bias_kernel,
        out_shape=jax.ShapeDtypeStruct((M, N), jnp.float32),
        grid_spec=pltpu.PrefetchScalarGridSpec(
            num_scalar_prefetch=0,
            grid=grid,
            in_specs=[
                pl.BlockSpec((bm, bk), lambda i, j, k: (i, k)),
                pl.BlockSpec((bk, bn), lambda i, j, k: (k, j)),
                pl.BlockSpec((1, bn), lambda i, j, k: (0, j)),
            ],
            out_specs=pl.BlockSpec((bm, bn), lambda i, j, k: (i, j)),
            scratch_shapes=[pltpu.VMEM((bm, bn), jnp.float32)],
        ),
        compiler_params=pltpu.CompilerParams(
            dimension_semantics=("parallel", "parallel", "arbitrary"),
            vmem_limit_bytes=_VMEM_LIMIT),
    )(x, w, b)


# ---------------------------------------------------------------------------
# Phase 2: time-chunked serial recurrence fused with the output Linear.
# ---------------------------------------------------------------------------
def _gru_recurrent_kernel(xp_ref, wzr_ref, whh_ref, wlin_ref, blin_ref, h0_ref,
                          y_ref, hfin_ref, h_carry, h_chunk,
                          *, hidim, tc, last_c, last_i):
    t = pl.program_id(1)

    @pl.when(t == 0)
    def _():
        h_carry[...] = h0_ref[...]

    two_h = 2 * hidim
    w_zr = wzr_ref[...]      # hoisted: loaded once per chunk, not per step
    w_hh = whh_ref[...]

    def sigmoid(v):
        return 1.0 / (1.0 + jnp.exp(-v))

    def step(i, h):
        xp_t = xp_ref[i]                                        # (bb, 3H)
        zr = sigmoid(jnp.dot(h, w_zr, preferred_element_type=jnp.float32)
                     + xp_t[:, :two_h])
        z = zr[:, :hidim]
        r = zr[:, hidim:]
        ht = jnp.tanh(jnp.dot(h * r, w_hh, preferred_element_type=jnp.float32)
                      + xp_t[:, two_h:])
        h_new = h + z * (ht - h)       # == (1-z)*h + z*ht, one fewer VPU op
        h_chunk[i] = h_new
        return h_new

    h = lax.fori_loop(0, tc, step, h_carry[...], unroll=True)
    h_carry[...] = h

    # Output Linear for the whole chunk -- off the serial h chain, so it can
    # overlap with the next chunk's DMA / recurrence.
    # TODO(synk): batch these tc small matmuls into a single (tc*bb, H)x(H, O)
    #   MXU call once reshapes across the sublane dim are guaranteed free.
    w_lin = wlin_ref[...]
    b_lin = blin_ref[...]
    for i in range(tc):
        y_ref[i] = (jnp.dot(h_chunk[i], w_lin,
                            preferred_element_type=jnp.float32) + b_lin)

    # Final hidden state = step with global time index T-1 (statically known
    # chunk/offset), so a ragged last chunk needs no per-step masking.
    @pl.when(t == last_c)
    def _():
        hfin_ref[...] = h_chunk[last_i]


def gru_forward(x, h0, params, *, time_chunk=16, batch_block=None):
    """x: (T, B, indim), h0: (B, hidim).

    Returns (Y: (T*B, outdim), h_final: (B, hidim)) matching the PyTorch module.
    `batch_block` < B adds a "parallel" batch grid axis to the recurrence
    (useful on v7x's 2 TensorCores; leave None on v5e/v6e).
    """
    x = x.astype(jnp.float32)
    h0 = h0.astype(jnp.float32)
    T, B, indim = x.shape
    hidim = h0.shape[1]
    (W_zh, W_zx, b_z, W_rh, W_rx, b_r, W_hh, W_hx, b_h, W_lin, b_lin) = params
    outdim = W_lin.shape[0]

    # Lane/sublane-aligned padded sizes.  Zero padding keeps padded hidden
    # lanes identically zero through the recurrence (z_pad=0.5, ht_pad=0 =>
    # h_pad stays 0), so valid lanes are untouched.
    Hp = _round_up(hidim, 128)
    Op = _round_up(outdim, 128)
    Bp = _round_up(B, 8)

    pad_hh = lambda w: _pad_dim(_pad_dim(w, 0, Hp), 1, Hp)   # (H,H) -> (Hp,Hp)
    pad_xh = lambda w: _pad_dim(w, 1, Hp)                    # (in,H) -> (in,Hp)
    pad_h = lambda v: _pad_dim(v, 0, Hp)

    W_zh_p, W_rh_p, W_hh_p = pad_hh(W_zh), pad_hh(W_rh), pad_hh(W_hh)
    W_zx_p, W_rx_p, W_hx_p = pad_xh(W_zx), pad_xh(W_rx), pad_xh(W_hx)
    b_z_p, b_r_p, b_h_p = pad_h(b_z), pad_h(b_r), pad_h(b_h)
    W_lin_t = _pad_dim(_pad_dim(W_lin.T, 0, Hp), 1, Op)      # (Hp, Op)
    b_lin_p = _pad_dim(b_lin, 0, Op).reshape(1, Op)

    # Fused parameter layouts (outside the hot path).
    W_x_cat = jnp.concatenate([W_zx_p, W_rx_p, W_hx_p], axis=1)        # (in, 3Hp)
    b_cat = jnp.concatenate([b_z_p, b_r_p, b_h_p]).reshape(1, 3 * Hp)  # (1, 3Hp)
    W_zr = jnp.concatenate([W_zh_p, W_rh_p], axis=1)                   # (Hp, 2Hp)

    x_p = _pad_dim(x, 1, Bp)                                           # (T, Bp, in)
    h0_p = _pad_dim(_pad_dim(h0, 0, Bp), 1, Hp)                        # (Bp, Hp)

    # --- Phase 1: hoisted input projection for all time steps at once ---
    xp = matmul_bias(x_p.reshape(T * Bp, indim), W_x_cat, b_cat)       # (T*Bp, 3Hp)
    xp = xp.reshape(T, Bp, 3 * Hp)   # free reshape; passed whole (no wrapper slices)

    # --- Phase 2: serial recurrence, chunked over time, fused output Linear ---
    tc = max(1, min(time_chunk, T))
    bb = Bp if batch_block is None else max(8, min(_round_up(batch_block, 8), Bp))
    if Bp % bb != 0:
        bb = Bp
    n_b = Bp // bb
    n_t = pl.cdiv(T, tc)
    last_c = (T - 1) // tc           # == n_t - 1
    last_i = (T - 1) % tc

    kernel = partial(_gru_recurrent_kernel, hidim=Hp, tc=tc,
                     last_c=last_c, last_i=last_i)

    y_pad, h_fin_p = pl.pallas_call(
        kernel,
        out_shape=(
            jax.ShapeDtypeStruct((T, Bp, Op), jnp.float32),
            jax.ShapeDtypeStruct((Bp, Hp), jnp.float32),
        ),
        grid_spec=pltpu.PrefetchScalarGridSpec(
            num_scalar_prefetch=0,
            grid=(n_b, n_t),                                  # time innermost (serial)
            in_specs=[
                pl.BlockSpec((tc, bb, 3 * Hp), lambda b, t: (t, b, 0)),  # xp
                pl.BlockSpec((Hp, 2 * Hp), lambda b, t: (0, 0)),         # [W_zh|W_rh]
                pl.BlockSpec((Hp, Hp), lambda b, t: (0, 0)),             # W_hh
                pl.BlockSpec((Hp, Op), lambda b, t: (0, 0)),             # W_lin^T
                pl.BlockSpec((1, Op), lambda b, t: (0, 0)),              # b_lin
                pl.BlockSpec((bb, Hp), lambda b, t: (b, 0)),             # h0
            ],
            out_specs=[
                pl.BlockSpec((tc, bb, Op), lambda b, t: (t, b, 0)),      # Y
                pl.BlockSpec((bb, Hp), lambda b, t: (b, 0)),             # final h
            ],
            scratch_shapes=[
                pltpu.VMEM((bb, Hp), jnp.float32),        # carried hidden state
                pltpu.VMEM((tc, bb, Hp), jnp.float32),    # per-chunk h_t
            ],
        ),
        compiler_params=pltpu.CompilerParams(
            dimension_semantics=("parallel", "arbitrary"),
            vmem_limit_bytes=_VMEM_LIMIT),
    )(xp, W_zr, W_hh_p, W_lin_t, b_lin_p, h0_p)

    # Un-pad.  The PyTorch forward concatenates the per-step (B, outdim)
    # outputs along dim 0 -> (T*B, outdim).
    y = y_pad[:, :B, :outdim].reshape(T * B, outdim)
    h_final = h_fin_p[:B, :hidim]
    return y, h_final


def init_params(key, indim, hidim, outdim):
    stdv = 1.0 / math.sqrt(hidim)
    names_shapes = [
        ("W_zh", (hidim, hidim)), ("W_zx", (indim, hidim)), ("b_z", (hidim,)),
        ("W_rh", (hidim, hidim)), ("W_rx", (indim, hidim)), ("b_r", (hidim,)),
        ("W_hh", (hidim, hidim)), ("W_hx", (indim, hidim)), ("b_h", (hidim,)),
        ("W_lin", (outdim, hidim)), ("b_lin", (outdim,)),
    ]
    keys = jax.random.split(key, len(names_shapes))
    params = []
    for k, (_, shape) in zip(keys, names_shapes):
        params.append(jax.random.uniform(k, shape, jnp.float32, -stdv, stdv))
    return tuple(params)


def gru_reference(x, h0, params):
    """Pure-JAX reference mirroring the PyTorch forward (full-precision dots)."""
    (W_zh, W_zx, b_z, W_rh, W_rx, b_r, W_hh, W_hx, b_h, W_lin, b_lin) = params
    hi = jax.lax.Precision.HIGHEST
    dot = lambda a, b: jnp.dot(a, b, precision=hi)
    h = h0
    ys = []
    for t in range(x.shape[0]):
        xt = x[t]
        z = jax.nn.sigmoid(dot(h, W_zh) + dot(xt, W_zx) + b_z)
        r = jax.nn.sigmoid(dot(h, W_rh) + dot(xt, W_rx) + b_r)
        ht = jnp.tanh(dot(h * r, W_hh) + dot(xt, W_hx) + b_h)
        h = (1 - z) * h + z * ht
        ys.append(dot(h, W_lin.T) + b_lin)
    return jnp.concatenate(ys, axis=0), h


if __name__ == "__main__":
    # Full-precision f32 matmuls everywhere so the Pallas kernels and the pure
    # JAX reference agree to 1e-5 (otherwise the MXU's fast bf16 path is used).
    jax.config.update("jax_default_matmul_precision", "highest")

    T, B = 8, 4
    indim, hidim, outdim = 8, 32, 16

    key = jax.random.PRNGKey(0)
    k_param, k_x, k_h = jax.random.split(key, 3)
    params = init_params(k_param, indim, hidim, outdim)

    x = jax.random.normal(k_x, (T, B, indim), jnp.float32)
    h0 = jax.random.normal(k_h, (B, hidim), jnp.float32)

    y, h_final = gru_forward(x, h0, params)
    y = jax.block_until_ready(y)
    h_final = jax.block_until_ready(h_final)

    y_ref, h_ref = gru_reference(x, h0, params)
    assert y.shape == (T * B, outdim) and h_final.shape == (B, hidim)
    assert jnp.allclose(y, y_ref, atol=1e-5, rtol=1e-5)
    assert jnp.allclose(h_final, h_ref, atol=1e-5, rtol=1e-5)

    print("KERNEL_OK")
</pallas_src>

<mosaic_0001>
module attributes {stable_mosaic.version = 11 : i64} {
  func.func @_matmul_bias_kernel(%arg0: i32, %arg1: i32, %arg2: i32, %arg3: memref<64x8xf32, #tpu.memory_space<vmem>>, %arg4: memref<8x384xf32, #tpu.memory_space<vmem>>, %arg5: memref<1x384xf32, #tpu.memory_space<vmem>>, %arg6: memref<64x384xf32, #tpu.memory_space<vmem>>, %arg7: memref<64x384xf32, #tpu.memory_space<vmem>>) attributes {dimension_semantics = [#tpu.dimension_semantics<parallel>, #tpu.dimension_semantics<parallel>, #tpu.dimension_semantics<arbitrary>], iteration_bounds = array<i64: 1, 1, 1>, scalar_prefetch = 0 : i64, scratch_operands = 1 : i64, tpu.core_type = #tpu.core_type<tc>, window_params = [{transform_indices = @transform_0, window_bounds = array<i64: 64, 8>}, {transform_indices = @transform_1, window_bounds = array<i64: 8, 384>}, {transform_indices = @transform_2, window_bounds = array<i64: 1, 384>}, {transform_indices = @transform_3, window_bounds = array<i64: 64, 384>}]} {
    %c0_i32 = arith.constant 0 : i32
    %0 = arith.cmpi eq, %arg2, %c0_i32 : i32
    %1 = arith.extui %0 : i1 to i32
    %c0_i32_0 = arith.constant 0 : i32
    %2 = arith.cmpi ne, %1, %c0_i32_0 : i32
    scf.if %2 {
      %cst_10 = arith.constant 0.000000e+00 : f32
      %12 = vector.broadcast %cst_10 : f32 to vector<64x384xf32>
      %c0_11 = arith.constant 0 : index
      %c0_12 = arith.constant 0 : index
      %13 = vector.load %arg7[%c0_11, %c0_12] : memref<64x384xf32, #tpu.memory_space<vmem>>, vector<64x384xf32>
      tpu.vector_store %arg7[%c0_11, %c0_12], %12 {strides = array<i32>} : memref<64x384xf32, #tpu.memory_space<vmem>>, vector<64x384xf32>,
    } else {
    }
    %c0 = arith.constant 0 : index
    %c0_1 = arith.constant 0 : index
    %3 = vector.load %arg7[%c0, %c0_1] : memref<64x384xf32, #tpu.memory_space<vmem>>, vector<64x384xf32>
    %c0_2 = arith.constant 0 : index
    %c0_3 = arith.constant 0 : index
    %4 = vector.load %arg3[%c0_2, %c0_3] : memref<64x8xf32, #tpu.memory_space<vmem>>, vector<64x8xf32>
    %c0_4 = arith.constant 0 : index
    %c0_5 = arith.constant 0 : index
    %5 = vector.load %arg4[%c0_4, %c0_5] : memref<8x384xf32, #tpu.memory_space<vmem>>, vector<8x384xf32>
    %cst = arith.constant dense<0.000000e+00> : vector<64x384xf32>
    %6 = tpu.matmul %4, %5, %cst {dimension_numbers = #tpu.dot_dimension_numbers<[1], [0], [0], [1], [0, 0, 1, 1], [], []>, precision = #tpu.contract_precision<fp32>} : vector<64x8xf32>, vector<8x384xf32>, vector<64x384xf32> -> vector<64x384xf32>
    %7 = arith.addf %3, %6 : vector<64x384xf32>
    %c0_6 = arith.constant 0 : index
    %c0_7 = arith.constant 0 : index
    %8 = vector.load %arg7[%c0_6, %c0_7] : memref<64x384xf32, #tpu.memory_space<vmem>>, vector<64x384xf32>
    tpu.vector_store %arg7[%c0_6, %c0_7], %7 {strides = array<i32>} : memref<64x384xf32, #tpu.memory_space<vmem>>, vector<64x384xf32>,
    %c0_i32_8 = arith.constant 0 : i32
    %9 = arith.cmpi eq, %arg2, %c0_i32_8 : i32
    %10 = arith.extui %9 : i1 to i32
    %c0_i32_9 = arith.constant 0 : i32
    %11 = arith.cmpi ne, %10, %c0_i32_9 : i32
    scf.if %11 {
      %c0_10 = arith.constant 0 : index
      %c0_11 = arith.constant 0 : index
      %12 = vector.load %arg7[%c0_10, %c0_11] : memref<64x384xf32, #tpu.memory_space<vmem>>, vector<64x384xf32>
      %c0_12 = arith.constant 0 : index
      %c0_13 = arith.constant 0 : index
      %13 = vector.load %arg5[%c0_12, %c0_13] : memref<1x384xf32, #tpu.memory_space<vmem>>, vector<1x384xf32>
      %14 = vector.broadcast %13 : vector<1x384xf32> to vector<64x384xf32>
      %15 = arith.addf %12, %14 : vector<64x384xf32>
      %c0_14 = arith.constant 0 : index
      %c0_15 = arith.constant 0 : index
      %16 = vector.load %arg6[%c0_14, %c0_15] : memref<64x384xf32, #tpu.memory_space<vmem>>, vector<64x384xf32>
      tpu.vector_store %arg6[%c0_14, %c0_15], %15 {strides = array<i32>} : memref<64x384xf32, #tpu.memory_space<vmem>>, vector<64x384xf32>,
    } else {
    }
    return
  }
  func.func @transform_0(%arg0: i32, %arg1: i32, %arg2: i32) -> (i32, i32) {
    %c0_i32 = arith.constant 0 : i32
    return %arg0, %arg2 : i32, i32
  }
  func.func @transform_1(%arg0: i32, %arg1: i32, %arg2: i32) -> (i32, i32) {
    %c0_i32 = arith.constant 0 : i32
    return %arg2, %arg1 : i32, i32
  }
  func.func @transform_2(%arg0: i32, %arg1: i32, %arg2: i32) -> (i32, i32) {
    %c0_i32 = arith.constant 0 : i32
    %c0_i32_0 = arith.constant 0 : i32
    return %c0_i32, %arg1 : i32, i32
  }
  func.func @transform_3(%arg0: i32, %arg1: i32, %arg2: i32) -> (i32, i32) {
    %c0_i32 = arith.constant 0 : i32
    return %arg0, %arg1 : i32, i32
  }
}

</mosaic_0001>

<llo_original>
// kernel: tpu_custom_call.1
$region0: #{tpu_custom_call.1}
  #allocation0 [shape = 'u32[]', space=smem, size = 0x4, offset = 0x4, fixed_abs, tag = 'smem constant byte address 0x4 - core index']
  #allocation1 [shape = 'u32[72,128]{1,0:T(1,128)}', space=vmem, size = 0x9000, scoped, tag = 'internal scratch']
  #allocation2 [shape = 'f32[64,384]{1,0:T(8,128)}', space=vmem, size = 0x18000, scoped, tag = 'scratch operand']
  %s0 = inlined_call_operand.vmem [shape: f32[64,8], index: 0, kind: input, shape index: {}]
  %s1 = inlined_call_operand.vmem [shape: f32[8,384], index: 1, kind: input, shape index: {}]
  %s2 = inlined_call_operand.vmem [shape: f32[1,384], index: 2, kind: input, shape index: {}]
  %s3 = inlined_call_operand.hbm [shape: f32[64,384], index: 3, kind: output, shape index: {}]
  %s4 = sld [smem:[#allocation0]]
  $region30: #{tpu_custom_call.1} parent=0
    _
  %s6 = ssub.s32 1, %s4
  %s7 = scalar_select 0, %s6, %s4
  $region1: #{tpu_custom_call.1} parent=0
    #allocation3 [shape = 'u8[98304]{0}', space=vmem, size = 0x18000, scoped, tag = 'output window, operand 0, single buffered']
    #allocation4 [shape = 's32[1]{0}', space=sflag, size = 0x4, scoped, tag = 'scoped memory for tpu_custom_call.1']
    %8 = vsyncpa [#allocation4], 0
    // Predicated region
    $region2: #{tpu_custom_call.1} parent=1 // pred_check
      _
    $region3: #{tpu_custom_call.1} parent=1 // pred_check_branch
      %10 = sbr.rel (0) target = $region5
    $region4: #{tpu_custom_call.1} parent=1 // pred_region
      _
    $region5: #{tpu_custom_call.1} parent=1 // pred_fallthru
      _
    // Predicated region
    $region6: #{tpu_custom_call.1} parent=1 // pred_check
      _
    $region7: #{tpu_custom_call.1} parent=1 // pred_check_branch
      %12 = sbr.rel (0) target = $region9
    $region8: #{tpu_custom_call.1} parent=1 // pred_region
      _
    $region9: #{tpu_custom_call.1} parent=1 // pred_fallthru
      _
    // Predicated region
    $region10: #{tpu_custom_call.1} parent=1 // pred_check
      _
    $region11: #{tpu_custom_call.1} parent=1 // pred_check_branch
      %14 = sbr.rel (0) target = $region13
    $region12: #{tpu_custom_call.1} parent=1 // pred_region
      _
    $region13: #{tpu_custom_call.1} parent=1 // pred_fallthru
      _
    %p15 = scmp.eq.s32.totalorder 0, 0
    // Predicated region
    $region14: #{tpu_custom_call.1} parent=1 // pred_check
      %p16 = pneg %p15
    $region15: #{tpu_custom_call.1} parent=1 // pred_check_branch
      %18 = sbr.rel (%p16) target = $region17
    $region16: #{tpu_custom_call.1} parent=1 // pred_region
      %19 = vst [vmem:[#allocation2] sm:$0xff] 0.0
      %20 = vst [vmem:[#allocation2 + $0x8] sm:$0xff] 0.0
      %21 = vst [vmem:[#allocation2 + $0x10] sm:$0xff] 0.0
      %22 = vst [vmem:[#allocation2 + $0x18] sm:$0xff] 0.0
      %23 = vst [vmem:[#allocation2 + $0x20] sm:$0xff] 0.0
      %24 = vst [vmem:[#allocation2 + $0x28] sm:$0xff] 0.0
      %25 = vst [vmem:[#allocation2 + $0x30] sm:$0xff] 0.0
      %26 = vst [vmem:[#allocation2 + $0x38] sm:$0xff] 0.0
      %27 = vst [vmem:[#allocation2 + $0x40] sm:$0xff] 0.0
      %28 = vst [vmem:[#allocation2 + $0x48] sm:$0xff] 0.0
      %29 = vst [vmem:[#allocation2 + $0x50] sm:$0xff] 0.0
      %30 = vst [vmem:[#allocation2 + $0x58] sm:$0xff] 0.0
      %31 = vst [vmem:[#allocation2 + $0x60] sm:$0xff] 0.0
      %32 = vst [vmem:[#allocation2 + $0x68] sm:$0xff] 0.0
      %33 = vst [vmem:[#allocation2 + $0x70] sm:$0xff] 0.0
      %34 = vst [vmem:[#allocation2 + $0x78] sm:$0xff] 0.0
      %35 = vst [vmem:[#allocation2 + $0x80] sm:$0xff] 0.0
      %36 = vst [vmem:[#allocation2 + $0x88] sm:$0xff] 0.0
      %37 = vst [vmem:[#allocation2 + $0x90] sm:$0xff] 0.0
      %38 = vst [vmem:[#allocation2 + $0x98] sm:$0xff] 0.0
      %39 = vst [vmem:[#allocation2 + $0xa0] sm:$0xff] 0.0
      %40 = vst [vmem:[#allocation2 + $0xa8] sm:$0xff] 0.0
      %41 = vst [vmem:[#allocation2 + $0xb0] sm:$0xff] 0.0
      %42 = vst [vmem:[#allocation2 + $0xb8] sm:$0xff] 0.0
    $region17: #{tpu_custom_call.1} parent=1 // pred_fallthru
      _
    %v43 = vld [vmem:[#allocation2] sm:$0xff]
    %v44 = vld [vmem:[#allocation2 + $0x8] sm:$0xff]
    %v45 = vld [vmem:[#allocation2 + $0x10] sm:$0xff]
    %v46 = vld [vmem:[#allocation2 + $0x18] sm:$0xff]
    %v47 = vld [vmem:[#allocation2 + $0x20] sm:$0xff]
    %v48 = vld [vmem:[#allocation2 + $0x28] sm:$0xff]
    %v49 = vld [vmem:[#allocation2 + $0x30] sm:$0xff]
    %v50 = vld [vmem:[#allocation2 + $0x38] sm:$0xff]
    %v51 = vld [vmem:[#allocation2 + $0x40] sm:$0xff]
    %v52 = vld [vmem:[#allocation2 + $0x48] sm:$0xff]
    %v53 = vld [vmem:[#allocation2 + $0x50] sm:$0xff]
    %v54 = vld [vmem:[#allocation2 + $0x58] sm:$0xff]
    %v55 = vld [vmem:[#allocation2 + $0x60] sm:$0xff]
    %v56 = vld [vmem:[#allocation2 + $0x68] sm:$0xff]
    %v57 = vld [vmem:[#allocation2 + $0x70] sm:$0xff]
    %v58 = vld [vmem:[#allocation2 + $0x78] sm:$0xff]
    %v59 = vld [vmem:[#allocation2 + $0x80] sm:$0xff]
    %v60 = vld [vmem:[#allocation2 + $0x88] sm:$0xff]
    %v61 = vld [vmem:[#allocation2 + $0x90] sm:$0xff]
    %v62 = vld [vmem:[#allocation2 + $0x98] sm:$0xff]
    %v63 = vld [vmem:[#allocation2 + $0xa0] sm:$0xff]
    %v64 = vld [vmem:[#allocation2 + $0xa8] sm:$0xff]
    %v65 = vld [vmem:[#allocation2 + $0xb0] sm:$0xff]
    %v66 = vld [vmem:[#allocation2 + $0xb8] sm:$0xff]
    %v67 = vld [vmem:[%s0] sm:$0xff]
    %v68 = vld [vmem:[%s0 + $0x8] sm:$0xff]
    %v69 = vld [vmem:[%s0 + $0x10] sm:$0xff]
    %v70 = vld [vmem:[%s0 + $0x18] sm:$0xff]
    %v71 = vld [vmem:[%s0 + $0x20] sm:$0xff]
    %v72 = vld [vmem:[%s0 + $0x28] sm:$0xff]
    %v73 = vld [vmem:[%s0 + $0x30] sm:$0xff]
    %v74 = vld [vmem:[%s0 + $0x38] sm:$0xff]
    %v75 = vld [vmem:[%s1] sm:$0xff]
    %v76 = vld [vmem:[%s1 + $0x8] sm:$0xff]
    %v77 = vld [vmem:[%s1 + $0x10] sm:$0xff]
    %vm78 = vcmask 64512
    %v80 = vsel %vm78, %v67, 0
    %v83 = vsel %vm78, %v68, 0
    %v86 = vsel %vm78, %v69, 0
    %v89 = vsel %vm78, %v70, 0
    %v92 = vsel %vm78, %v71, 0
    %v95 = vsel %vm78, %v72, 0
    %v98 = vsel %vm78, %v73, 0
    %v101 = vsel %vm78, %v74, 0
    %103 = vmatpush.msra.mxu0 0.0
    %104 = vmatpush.msra.mxu0 0.0
    %105 = vmatpush.msra.mxu0 0.0
    %106 = vmatpush.msra.mxu0 0.0
    %107 = vmatpush.msra.mxu0 0.0
    %108 = vmatpush.msra.mxu0 0.0
    %109 = vmatpush.msra.mxu0 0.0
    %110 = vmatpush.msra.mxu0 0.0
    %111 = vmatpush.msra.mxu0 0.0
    %112 = vmatpush.msra.mxu0 0.0
    %113 = vmatpush.msra.mxu0 0.0
    %114 = vmatpush.msra.mxu0 0.0
    %115 = vmatpush.msra.mxu0 0.0
    %116 = vmatpush.msra.mxu0 0.0
    %117 = vmatpush.msra.mxu0 0.0
    %v118 = vand.u32 %v75, 4294901760
    %119 = vmatpush.msra.mxu0 %v118
    %v120 = vand.u32 %v80, 4294901760
    %v121 = vsub.f32 %v80, %v120
    %v122 = vand.u32 %v121, 4294901760
    %v123 = vsub.f32 %v121, %v122
    %v124 = vand.u32 %v123, 4294901760
    %125 = vmatmul.f32.gmra.mxu0 %v124
    %v126 = vpop.f32.mrf.mxu0
    %v127 = vadd.f32 0.0, %v126
    %v128 = vand.u32 %v83, 4294901760
    %v129 = vsub.f32 %v83, %v128
    %v130 = vand.u32 %v129, 4294901760
    %v131 = vsub.f32 %v129, %v130
    %v132 = vand.u32 %v131, 4294901760
    %133 = vmatmul.f32.gmra.mxu0 %v132
    %v134 = vpop.f32.mrf.mxu0
    %v135 = vadd.f32 0.0, %v134
    %v136 = vand.u32 %v86, 4294901760
    %v137 = vsub.f32 %v86, %v136
    %v138 = vand.u32 %v137, 4294901760
    %v139 = vsub.f32 %v137, %v138
    %v140 = vand.u32 %v139, 4294901760
    %141 = vmatmul.f32.gmra.mxu0 %v140
    %v142 = vpop.f32.mrf.mxu0
    %v143 = vadd.f32 0.0, %v142
    %v144 = vand.u32 %v89, 4294901760
    %v145 = vsub.f32 %v89, %v144
    %v146 = vand.u32 %v145, 4294901760
    %v147 = vsub.f32 %v145, %v146
    %v148 = vand.u32 %v147, 4294901760
    %149 = vmatmul.f32.gmra.mxu0 %v148
    %v150 = vpop.f32.mrf.mxu0
    %v151 = vadd.f32 0.0, %v150
    %v152 = vand.u32 %v92, 4294901760
    %v153 = vsub.f32 %v92, %v152
    %v154 = vand.u32 %v153, 4294901760
    %v155 = vsub.f32 %v153, %v154
    %v156 = vand.u32 %v155, 4294901760
    %157 = vmatmul.f32.gmra.mxu0 %v156
    %v158 = vpop.f32.mrf.mxu0
    %v159 = vadd.f32 0.0, %v158
    %v160 = vand.u32 %v95, 4294901760
    %v161 = vsub.f32 %v95, %v160
    %v162 = vand.u32 %v161, 4294901760
    %v163 = vsub.f32 %v161, %v162
    %v164 = vand.u32 %v163, 4294901760
    %165 = vmatmul.f32.gmra.mxu0 %v164
    %v166 = vpop.f32.mrf.mxu0
    %v167 = vadd.f32 0.0, %v166
    %v168 = vand.u32 %v98, 4294901760
    %v169 = vsub.f32 %v98, %v168
    %v170 = vand.u32 %v169, 4294901760
    %v171 = vsub.f32 %v169, %v170
    %v172 = vand.u32 %v171, 4294901760
    %173 = vmatmul.f32.gmra.mxu0 %v172
    %v174 = vpop.f32.mrf.mxu0
    %v175 = vadd.f32 0.0, %v174
    %v176 = vand.u32 %v101, 4294901760
    %v177 = vsub.f32 %v101, %v176
    %v178 = vand.u32 %v177, 4294901760
    %v179 = vsub.f32 %v177, %v178
    %v180 = vand.u32 %v179, 4294901760
    %181 = vmatmul.f32.gmra.mxu0 %v180
    %v182 = vpop.f32.mrf.mxu0
    %v183 = vadd.f32 0.0, %v182
    %184 = vdwg.mxu0
    %185 = vmatpush.msra.mxu0 0.0
    %186 = vmatpush.msra.mxu0 0.0
    %187 = vmatpush.msra.mxu0 0.0
    %188 = vmatpush.msra.mxu0 0.0
    %189 = vmatpush.msra.mxu0 0.0
    %190 = vmatpush.msra.mxu0 0.0
    %191 = vmatpush.msra.mxu0 0.0
    %192 = vmatpush.msra.mxu0 0.0
    %193 = vmatpush.msra.mxu0 0.0
    %194 = vmatpush.msra.mxu0 0.0
    %195 = vmatpush.msra.mxu0 0.0
    %196 = vmatpush.msra.mxu0 0.0
    %197 = vmatpush.msra.mxu0 0.0
    %198 = vmatpush.msra.mxu0 0.0
    %199 = vmatpush.msra.mxu0 0.0
    %v200 = vand.u32 %v75, 4294901760
    %v201 = vsub.f32 %v75, %v200
    %v202 = vand.u32 %v201, 4294901760
    %v203 = vsub.f32 %v201, %v202
    %v204 = vand.u32 %v203, 4294901760
    %205 = vmatpush.msra.mxu0 %v204
    %v206 = vand.u32 %v80, 4294901760
    %207 = vmatmul.f32.gmra.mxu0 %v206
    %v208 = vpop.f32.mrf.mxu0
    %v209 = vadd.f32 %v127, %v208
    %v210 = vand.u32 %v83, 4294901760
    %211 = vmatmul.f32.gmra.mxu0 %v210
    %v212 = vpop.f32.mrf.mxu0
    %v213 = vadd.f32 %v135, %v212
    %v214 = vand.u32 %v86, 4294901760
    %215 = vmatmul.f32.gmra.mxu0 %v214
    %v216 = vpop.f32.mrf.mxu0
    %v217 = vadd.f32 %v143, %v216
    %v218 = vand.u32 %v89, 4294901760
    %219 = vmatmul.f32.gmra.mxu0 %v218
    %v220 = vpop.f32.mrf.mxu0
    %v221 = vadd.f32 %v151, %v220
    %v222 = vand.u32 %v92, 4294901760
    %223 = vmatmul.f32.gmra.mxu0 %v222
    %v224 = vpop.f32.mrf.mxu0
    %v225 = vadd.f32 %v159, %v224
    %v226 = vand.u32 %v95, 4294901760
    %227 = vmatmul.f32.gmra.mxu0 %v226
    %v228 = vpop.f32.mrf.mxu0
    %v229 = vadd.f32 %v167, %v228
    %v230 = vand.u32 %v98, 4294901760
    %231 = vmatmul.f32.gmra.mxu0 %v230
    %v232 = vpop.f32.mrf.mxu0
    %v233 = vadd.f32 %v175, %v232
    %v234 = vand.u32 %v101, 4294901760
    %235 = vmatmul.f32.gmra.mxu0 %v234
    %v236 = vpop.f32.mrf.mxu0
    %v237 = vadd.f32 %v183, %v236
    %238 = vdwg.mxu0
    %239 = vmatpush.msra.mxu0 0.0
    %240 = vmatpush.msra.mxu0 0.0
    %241 = vmatpush.msra.mxu0 0.0
    %242 = vmatpush.msra.mxu0 0.0
    %243 = vmatpush.msra.mxu0 0.0
    %244 = vmatpush.msra.mxu0 0.0
    %245 = vmatpush.msra.mxu0 0.0
    %246 = vmatpush.msra.mxu0 0.0
    %247 = vmatpush.msra.mxu0 0.0
    %248 = vmatpush.msra.mxu0 0.0
    %249 = vmatpush.msra.mxu0 0.0
    %250 = vmatpush.msra.mxu0 0.0
    %251 = vmatpush.msra.mxu0 0.0
    %252 = vmatpush.msra.mxu0 0.0
    %253 = vmatpush.msra.mxu0 0.0
    %v254 = vand.u32 %v75, 4294901760
    %v255 = vsub.f32 %v75, %v254
    %256 = vmatpush.msra.mxu0 %v255
    %v257 = vand.u32 %v80, 4294901760
    %v258 = vsub.f32 %v80, %v257
    %259 = vmatmul.f32.gmra.mxu0 %v258
    %v260 = vpop.f32.mrf.mxu0
    %v261 = vadd.f32 %v209, %v260
    %v262 = vand.u32 %v83, 4294901760
    %v263 = vsub.f32 %v83, %v262
    %264 = vmatmul.f32.gmra.mxu0 %v263
    %v265 = vpop.f32.mrf.mxu0
    %v266 = vadd.f32 %v213, %v265
    %v267 = vand.u32 %v86, 4294901760
    %v268 = vsub.f32 %v86, %v267
    %269 = vmatmul.f32.gmra.mxu0 %v268
    %v270 = vpop.f32.mrf.mxu0
    %v271 = vadd.f32 %v217, %v270
    %v272 = vand.u32 %v89, 4294901760
    %v273 = vsub.f32 %v89, %v272
    %274 = vmatmul.f32.gmra.mxu0 %v273
    %v275 = vpop.f32.mrf.mxu0
    %v276 = vadd.f32 %v221, %v275
    %v277 = vand.u32 %v92, 4294901760
    %v278 = vsub.f32 %v92, %v277
    %279 = vmatmul.f32.gmra.mxu0 %v278
    %v280 = vpop.f32.mrf.mxu0
    %v281 = vadd.f32 %v225, %v280
    %v282 = vand.u32 %v95, 4294901760
    %v283 = vsub.f32 %v95, %v282
    %284 = vmatmul.f32.gmra.mxu0 %v283
    %v285 = vpop.f32.mrf.mxu0
    %v286 = vadd.f32 %v229, %v285
    %v287 = vand.u32 %v98, 4294901760
    %v288 = vsub.f32 %v98, %v287
    %289 = vmatmul.f32.gmra.mxu0 %v288
    %v290 = vpop.f32.mrf.mxu0
    %v291 = vadd.f32 %v233, %v290
    %v292 = vand.u32 %v101, 4294901760
    %v293 = vsub.f32 %v101, %v292
    %294 = vmatmul.f32.gmra.mxu0 %v293
    %v295 = vpop.f32.mrf.mxu0
    %v296 = vadd.f32 %v237, %v295
    %297 = vdwg.mxu0
    %298 = vmatpush.msra.mxu0 0.0
    %299 = vmatpush.msra.mxu0 0.0
    %300 = vmatpush.msra.mxu0 0.0
    %301 = vmatpush.msra.mxu0 0.0
    %302 = vmatpush.msra.mxu0 0.0
    %303 = vmatpush.msra.mxu0 0.0
    %304 = vmatpush.msra.mxu0 0.0
    %305 = vmatpush.msra.mxu0 0.0
    %306 = vmatpush.msra.mxu0 0.0
    %307 = vmatpush.msra.mxu0 0.0
    %308 = vmatpush.msra.mxu0 0.0
    %309 = vmatpush.msra.mxu0 0.0
    %310 = vmatpush.msra.mxu0 0.0
    %311 = vmatpush.msra.mxu0 0.0
    %312 = vmatpush.msra.mxu0 0.0
    %v313 = vand.u32 %v75, 4294901760
    %314 = vmatpush.msra.mxu0 %v313
    %v315 = vand.u32 %v80, 4294901760
    %v316 = vsub.f32 %v80, %v315
    %v317 = vand.u32 %v316, 4294901760
    %318 = vmatmul.f32.gmra.mxu0 %v317
    %v319 = vpop.f32.mrf.mxu0
    %v320 = vadd.f32 %v261, %v319
    %v321 = vand.u32 %v83, 4294901760
    %v322 = vsub.f32 %v83, %v321
    %v323 = vand.u32 %v322, 4294901760
    %324 = vmatmul.f32.gmra.mxu0 %v323
    %v325 = vpop.f32.mrf.mxu0
    %v326 = vadd.f32 %v266, %v325
    %v327 = vand.u32 %v86, 4294901760
    %v328 = vsub.f32 %v86, %v327
    %v329 = vand.u32 %v328, 4294901760
    %330 = vmatmul.f32.gmra.mxu0 %v329
    %v331 = vpop.f32.mrf.mxu0
    %v332 = vadd.f32 %v271, %v331
    %v333 = vand.u32 %v89, 4294901760
    %v334 = vsub.f32 %v89, %v333
    %v335 = vand.u32 %v334, 4294901760
    %336 = vmatmul.f32.gmra.mxu0 %v335
    %v337 = vpop.f32.mrf.mxu0
    %v338 = vadd.f32 %v276, %v337
    %v339 = vand.u32 %v92, 4294901760
    %v340 = vsub.f32 %v92, %v339
    %v341 = vand.u32 %v340, 4294901760
    %342 = vmatmul.f32.gmra.mxu0 %v341
    %v343 = vpop.f32.mrf.mxu0
    %v344 = vadd.f32 %v281, %v343
    %v345 = vand.u32 %v95, 4294901760
    %v346 = vsub.f32 %v95, %v345
    %v347 = vand.u32 %v346, 4294901760
    %348 = vmatmul.f32.gmra.mxu0 %v347
    %v349 = vpop.f32.mrf.mxu0
    %v350 = vadd.f32 %v286, %v349
    %v351 = vand.u32 %v98, 4294901760
    %v352 = vsub.f32 %v98, %v351
    %v353 = vand.u32 %v352, 4294901760
    %354 = vmatmul.f32.gmra.mxu0 %v353
    %v355 = vpop.f32.mrf.mxu0
    %v356 = vadd.f32 %v291, %v355
    %v357 = vand.u32 %v101, 4294901760
    %v358 = vsub.f32 %v101, %v357
    %v359 = vand.u32 %v358, 4294901760
    %360 = vmatmul.f32.gmra.mxu0 %v359
    %v361 = vpop.f32.mrf.mxu0
    %v362 = vadd.f32 %v296, %v361
    %363 = vdwg.mxu0
    %364 = vmatpush.msra.mxu0 0.0
    %365 = vmatpush.msra.mxu0 0.0
    %366 = vmatpush.msra.mxu0 0.0
    %367 = vmatpush.msra.mxu0 0.0
    %368 = vmatpush.msra.mxu0 0.0
    %369 = vmatpush.msra.mxu0 0.0
    %370 = vmatpush.msra.mxu0 0.0
    %371 = vmatpush.msra.mxu0 0.0
    %372 = vmatpush.msra.mxu0 0.0
    %373 = vmatpush.msra.mxu0 0.0
    %374 = vmatpush.msra.mxu0 0.0
    %375 = vmatpush.msra.mxu0 0.0
    %376 = vmatpush.msra.mxu0 0.0
    %377 = vmatpush.msra.mxu0 0.0
    %378 = vmatpush.msra.mxu0 0.0
    %v379 = vand.u32 %v75, 4294901760
    %v380 = vsub.f32 %v75, %v379
    %v381 = vand.u32 %v380, 4294901760
    %382 = vmatpush.msra.mxu0 %v381
    %v383 = vand.u32 %v80, 4294901760
    %384 = vmatmul.f32.gmra.mxu0 %v383
    %v385 = vpop.f32.mrf.mxu0
    %v386 = vadd.f32 %v320, %v385
    %v387 = vand.u32 %v83, 4294901760
    %388 = vmatmul.f32.gmra.mxu0 %v387
    %v389 = vpop.f32.mrf.mxu0
    %v390 = vadd.f32 %v326, %v389
    %v391 = vand.u32 %v86, 4294901760
    %392 = vmatmul.f32.gmra.mxu0 %v391
    %v393 = vpop.f32.mrf.mxu0
    %v394 = vadd.f32 %v332, %v393
    %v395 = vand.u32 %v89, 4294901760
    %396 = vmatmul.f32.gmra.mxu0 %v395
    %v397 = vpop.f32.mrf.mxu0
    %v398 = vadd.f32 %v338, %v397
    %v399 = vand.u32 %v92, 4294901760
    %400 = vmatmul.f32.gmra.mxu0 %v399
    %v401 = vpop.f32.mrf.mxu0
    %v402 = vadd.f32 %v344, %v401
    %v403 = vand.u32 %v95, 4294901760
    %404 = vmatmul.f32.gmra.mxu0 %v403
    %v405 = vpop.f32.mrf.mxu0
    %v406 = vadd.f32 %v350, %v405
    %v407 = vand.u32 %v98, 4294901760
    %408 = vmatmul.f32.gmra.mxu0 %v407
    %v409 = vpop.f32.mrf.mxu0
    %v410 = vadd.f32 %v356, %v409
    %v411 = vand.u32 %v101, 4294901760
    %412 = vmatmul.f32.gmra.mxu0 %v411
    %v413 = vpop.f32.mrf.mxu0
    %v414 = vadd.f32 %v362, %v413
    %415 = vdwg.mxu0
    %416 = vmatpush.msra.mxu0 0.0
    %417 = vmatpush.msra.mxu0 0.0
    %418 = vmatpush.msra.mxu0 0.0
    %419 = vmatpush.msra.mxu0 0.0
    %420 = vmatpush.msra.mxu0 0.0
    %421 = vmatpush.msra.mxu0 0.0
    %422 = vmatpush.msra.mxu0 0.0
    %423 = vmatpush.msra.mxu0 0.0
    %424 = vmatpush.msra.mxu0 0.0
    %425 = vmatpush.msra.mxu0 0.0
    %426 = vmatpush.msra.mxu0 0.0
    %427 = vmatpush.msra.mxu0 0.0
    %428 = vmatpush.msra.mxu0 0.0
    %429 = vmatpush.msra.mxu0 0.0
    %430 = vmatpush.msra.mxu0 0.0
    %v431 = vand.u32 %v75, 4294901760
    %432 = vmatpush.msra.mxu0 %v431
    %v433 = vand.u32 %v80, 4294901760
    %434 = vmatmul.f32.gmra.mxu0 %v433
    %v435 = vpop.f32.mrf.mxu0
    %v436 = vadd.f32 %v386, %v435
    %v437 = vand.u32 %v83, 4294901760
    %438 = vmatmul.f32.gmra.mxu0 %v437
    %v439 = vpop.f32.mrf.mxu0
    %v440 = vadd.f32 %v390, %v439
    %v441 = vand.u32 %v86, 4294901760
    %442 = vmatmul.f32.gmra.mxu0 %v441
    %v443 = vpop.f32.mrf.mxu0
    %v444 = vadd.f32 %v394, %v443
    %v445 = vand.u32 %v89, 4294901760
    %446 = vmatmul.f32.gmra.mxu0 %v445
    %v447 = vpop.f32.mrf.mxu0
    %v448 = vadd.f32 %v398, %v447
    %v449 = vand.u32 %v92, 4294901760
    %450 = vmatmul.f32.gmra.mxu0 %v449
    %v451 = vpop.f32.mrf.mxu0
    %v452 = vadd.f32 %v402, %v451
    %v453 = vand.u32 %v95, 4294901760
    %454 = vmatmul.f32.gmra.mxu0 %v453
    %v455 = vpop.f32.mrf.mxu0
    %v456 = vadd.f32 %v406, %v455
    %v457 = vand.u32 %v98, 4294901760
    %458 = vmatmul.f32.gmra.mxu0 %v457
    %v459 = vpop.f32.mrf.mxu0
    %v460 = vadd.f32 %v410, %v459
    %v461 = vand.u32 %v101, 4294901760
    %462 = vmatmul.f32.gmra.mxu0 %v461
    %v463 = vpop.f32.mrf.mxu0
    %v464 = vadd.f32 %v414, %v463
    %465 = vdwg.mxu0
    %466 = vmatpush.msra.mxu0 0.0
    %467 = vmatpush.msra.mxu0 0.0
    %468 = vmatpush.msra.mxu0 0.0
    %469 = vmatpush.msra.mxu0 0.0
    %470 = vmatpush.msra.mxu0 0.0
    %471 = vmatpush.msra.mxu0 0.0
    %472 = vmatpush.msra.mxu0 0.0
    %473 = vmatpush.msra.mxu0 0.0
    %474 = vmatpush.msra.mxu0 0.0
    %475 = vmatpush.msra.mxu0 0.0
    %476 = vmatpush.msra.mxu0 0.0
    %477 = vmatpush.msra.mxu0 0.0
    %478 = vmatpush.msra.mxu0 0.0
    %479 = vmatpush.msra.mxu0 0.0
    %480 = vmatpush.msra.mxu0 0.0
    %v481 = vand.u32 %v76, 4294901760
    %482 = vmatpush.msra.mxu0 %v481
    %v483 = vand.u32 %v80, 4294901760
    %v484 = vsub.f32 %v80, %v483
    %v485 = vand.u32 %v484, 4294901760
    %v486 = vsub.f32 %v484, %v485
    %v487 = vand.u32 %v486, 4294901760
    %488 = vmatmul.f32.gmra.mxu0 %v487
    %v489 = vpop.f32.mrf.mxu0
    %v490 = vadd.f32 0.0, %v489
    %v491 = vand.u32 %v83, 4294901760
    %v492 = vsub.f32 %v83, %v491
    %v493 = vand.u32 %v492, 4294901760
    %v494 = vsub.f32 %v492, %v493
    %v495 = vand.u32 %v494, 4294901760
    %496 = vmatmul.f32.gmra.mxu0 %v495
    %v497 = vpop.f32.mrf.mxu0
    %v498 = vadd.f32 0.0, %v497
    %v499 = vand.u32 %v86, 4294901760
    %v500 = vsub.f32 %v86, %v499
    %v501 = vand.u32 %v500, 4294901760
    %v502 = vsub.f32 %v500, %v501
    %v503 = vand.u32 %v502, 4294901760
    %504 = vmatmul.f32.gmra.mxu0 %v503
    %v505 = vpop.f32.mrf.mxu0
    %v506 = vadd.f32 0.0, %v505
    %v507 = vand.u32 %v89, 4294901760
    %v508 = vsub.f32 %v89, %v507
    %v509 = vand.u32 %v508, 4294901760
    %v510 = vsub.f32 %v508, %v509
    %v511 = vand.u32 %v510, 4294901760
    %512 = vmatmul.f32.gmra.mxu0 %v511
    %v513 = vpop.f32.mrf.mxu0
    %v514 = vadd.f32 0.0, %v513
    %v515 = vand.u32 %v92, 4294901760
    %v516 = vsub.f32 %v92, %v515
    %v517 = vand.u32 %v516, 4294901760
    %v518 = vsub.f32 %v516, %v517
    %v519 = vand.u32 %v518, 4294901760
    %520 = vmatmul.f32.gmra.mxu0 %v519
    %v521 = vpop.f32.mrf.mxu0
    %v522 = vadd.f32 0.0, %v521
    %v523 = vand.u32 %v95, 4294901760
    %v524 = vsub.f32 %v95, %v523
    %v525 = vand.u32 %v524, 4294901760
    %v526 = vsub.f32 %v524, %v525
    %v527 = vand.u32 %v526, 4294901760
    %528 = vmatmul.f32.gmra.mxu0 %v527
    %v529 = vpop.f32.mrf.mxu0
    %v530 = vadd.f32 0.0, %v529
    %v531 = vand.u32 %v98, 4294901760
    %v532 = vsub.f32 %v98, %v531
    %v533 = vand.u32 %v532, 4294901760
    %v534 = vsub.f32 %v532, %v533
    %v535 = vand.u32 %v534, 4294901760
    %536 = vmatmul.f32.gmra.mxu0 %v535
    %v537 = vpop.f32.mrf.mxu0
    %v538 = vadd.f32 0.0, %v537
    %v539 = vand.u32 %v101, 4294901760
    %v540 = vsub.f32 %v101, %v539
    %v541 = vand.u32 %v540, 4294901760
    %v542 = vsub.f32 %v540, %v541
    %v543 = vand.u32 %v542, 4294901760
    %544 = vmatmul.f32.gmra.mxu0 %v543
    %v545 = vpop.f32.mrf.mxu0
    %v546 = vadd.f32 0.0, %v545
    %547 = vdwg.mxu0
    %548 = vmatpush.msra.mxu0 0.0
    %549 = vmatpush.msra.mxu0 0.0
    %550 = vmatpush.msra.mxu0 0.0
    %551 = vmatpush.msra.mxu0 0.0
    %552 = vmatpush.msra.mxu0 0.0
    %553 = vmatpush.msra.mxu0 0.0
    %554 = vmatpush.msra.mxu0 0.0
    %555 = vmatpush.msra.mxu0 0.0
    %556 = vmatpush.msra.mxu0 0.0
    %557 = vmatpush.msra.mxu0 0.0
    %558 = vmatpush.msra.mxu0 0.0
    %559 = vmatpush.msra.mxu0 0.0
    %560 = vmatpush.msra.mxu0 0.0
    %561 = vmatpush.msra.mxu0 0.0
    %562 = vmatpush.msra.mxu0 0.0
    %v563 = vand.u32 %v76, 4294901760
    %v564 = vsub.f32 %v76, %v563
    %v565 = vand.u32 %v564, 4294901760
    %v566 = vsub.f32 %v564, %v565
    %v567 = vand.u32 %v566, 4294901760
    %568 = vmatpush.msra.mxu0 %v567
    %v569 = vand.u32 %v80, 4294901760
    %570 = vmatmul.f32.gmra.mxu0 %v569
    %v571 = vpop.f32.mrf.mxu0
    %v572 = vadd.f32 %v490, %v571
    %v573 = vand.u32 %v83, 4294901760
    %574 = vmatmul.f32.gmra.mxu0 %v573
    %v575 = vpop.f32.mrf.mxu0
    %v576 = vadd.f32 %v498, %v575
    %v577 = vand.u32 %v86, 4294901760
    %578 = vmatmul.f32.gmra.mxu0 %v577
    %v579 = vpop.f32.mrf.mxu0
    %v580 = vadd.f32 %v506, %v579
    %v581 = vand.u32 %v89, 4294901760
    %582 = vmatmul.f32.gmra.mxu0 %v581
    %v583 = vpop.f32.mrf.mxu0
    %v584 = vadd.f32 %v514, %v583
    %v585 = vand.u32 %v92, 4294901760
    %586 = vmatmul.f32.gmra.mxu0 %v585
    %v587 = vpop.f32.mrf.mxu0
    %v588 = vadd.f32 %v522, %v587
    %v589 = vand.u32 %v95, 4294901760
    %590 = vmatmul.f32.gmra.mxu0 %v589
    %v591 = vpop.f32.mrf.mxu0
    %v592 = vadd.f32 %v530, %v591
    %v593 = vand.u32 %v98, 4294901760
    %594 = vmatmul.f32.gmra.mxu0 %v593
    %v595 = vpop.f32.mrf.mxu0
    %v596 = vadd.f32 %v538, %v595
    %v597 = vand.u32 %v101, 4294901760
    %598 = vmatmul.f32.gmra.mxu0 %v597
    %v599 = vpop.f32.mrf.mxu0
    %v600 = vadd.f32 %v546, %v599
    %601 = vdwg.mxu0
    %602 = vmatpush.msra.mxu0 0.0
    %603 = vmatpush.msra.mxu0 0.0
    %604 = vmatpush.msra.mxu0 0.0
    %605 = vmatpush.msra.mxu0 0.0
    %606 = vmatpush.msra.mxu0 0.0
    %607 = vmatpush.msra.mxu0 0.0
    %608 = vmatpush.msra.mxu0 0.0
    %609 = vmatpush.msra.mxu0 0.0
    %610 = vmatpush.msra.mxu0 0.0
    %611 = vmatpush.msra.mxu0 0.0
    %612 = vmatpush.msra.mxu0 0.0
    %613 = vmatpush.msra.mxu0 0.0
    %614 = vmatpush.msra.mxu0 0.0
    %615 = vmatpush.msra.mxu0 0.0
    %616 = vmatpush.msra.mxu0 0.0
    %v617 = vand.u32 %v76, 4294901760
    %v618 = vsub.f32 %v76, %v617
    %619 = vmatpush.msra.mxu0 %v618
    %v620 = vand.u32 %v80, 4294901760
    %v621 = vsub.f32 %v80, %v620
    %622 = vmatmul.f32.gmra.mxu0 %v621
    %v623 = vpop.f32.mrf.mxu0
    %v624 = vadd.f32 %v572, %v623
    %v625 = vand.u32 %v83, 4294901760
    %v626 = vsub.f32 %v83, %v625
    %627 = vmatmul.f32.gmra.mxu0 %v626
    %v628 = vpop.f32.mrf.mxu0
    %v629 = vadd.f32 %v576, %v628
    %v630 = vand.u32 %v86, 4294901760
    %v631 = vsub.f32 %v86, %v630
    %632 = vmatmul.f32.gmra.mxu0 %v631
    %v633 = vpop.f32.mrf.mxu0
    %v634 = vadd.f32 %v580, %v633
    %v635 = vand.u32 %v89, 4294901760
    %v636 = vsub.f32 %v89, %v635
    %637 = vmatmul.f32.gmra.mxu0 %v636
    %v638 = vpop.f32.mrf.mxu0
    %v639 = vadd.f32 %v584, %v638
    %v640 = vand.u32 %v92, 4294901760
    %v641 = vsub.f32 %v92, %v640
    %642 = vmatmul.f32.gmra.mxu0 %v641
    %v643 = vpop.f32.mrf.mxu0
    %v644 = vadd.f32 %v588, %v643
    %v645 = vand.u32 %v95, 4294901760
    %v646 = vsub.f32 %v95, %v645
    %647 = vmatmul.f32.gmra.mxu0 %v646
    %v648 = vpop.f32.mrf.mxu0
    %v649 = vadd.f32 %v592, %v648
    %v650 = vand.u32 %v98, 4294901760
    %v651 = vsub.f32 %v98, %v650
    %652 = vmatmul.f32.gmra.mxu0 %v651
    %v653 = vpop.f32.mrf.mxu0
    %v654 = vadd.f32 %v596, %v653
    %v655 = vand.u32 %v101, 4294901760
    %v656 = vsub.f32 %v101, %v655
    %657 = vmatmul.f32.gmra.mxu0 %v656
    %v658 = vpop.f32.mrf.mxu0
    %v659 = vadd.f32 %v600, %v658
    %660 = vdwg.mxu0
    %661 = vmatpush.msra.mxu0 0.0
    %662 = vmatpush.msra.mxu0 0.0
    %663 = vmatpush.msra.mxu0 0.0
    %664 = vmatpush.msra.mxu0 0.0
    %665 = vmatpush.msra.mxu0 0.0
    %666 = vmatpush.msra.mxu0 0.0
    %667 = vmatpush.msra.mxu0 0.0
    %668 = vmatpush.msra.mxu0 0.0
    %669 = vmatpush.msra.mxu0 0.0
    %670 = vmatpush.msra.mxu0 0.0
    %671 = vmatpush.msra.mxu0 0.0
    %672 = vmatpush.msra.mxu0 0.0
    %673 = vmatpush.msra.mxu0 0.0
    %674 = vmatpush.msra.mxu0 0.0
    %675 = vmatpush.msra.mxu0 0.0
    %v676 = vand.u32 %v76, 4294901760
    %677 = vmatpush.msra.mxu0 %v676
    %v678 = vand.u32 %v80, 4294901760
    %v679 = vsub.f32 %v80, %v678
    %v680 = vand.u32 %v679, 4294901760
    %681 = vmatmul.f32.gmra.mxu0 %v680
    %v682 = vpop.f32.mrf.mxu0
    %v683 = vadd.f32 %v624, %v682
    %v684 = vand.u32 %v83, 4294901760
    %v685 = vsub.f32 %v83, %v684
    %v686 = vand.u32 %v685, 4294901760
    %687 = vmatmul.f32.gmra.mxu0 %v686
    %v688 = vpop.f32.mrf.mxu0
    %v689 = vadd.f32 %v629, %v688
    %v690 = vand.u32 %v86, 4294901760
    %v691 = vsub.f32 %v86, %v690
    %v692 = vand.u32 %v691, 4294901760
    %693 = vmatmul.f32.gmra.mxu0 %v692
    %v694 = vpop.f32.mrf.mxu0
    %v695 = vadd.f32 %v634, %v694
    %v696 = vand.u32 %v89, 4294901760
    %v697 = vsub.f32 %v89, %v696
    %v698 = vand.u32 %v697, 4294901760
    %699 = vmatmul.f32.gmra.mxu0 %v698
    %v700 = vpop.f32.mrf.mxu0
    %v701 = vadd.f32 %v639, %v700
    %v702 = vand.u32 %v92, 4294901760
    %v703 = vsub.f32 %v92, %v702
    %v704 = vand.u32 %v703, 4294901760
    %705 = vmatmul.f32.gmra.mxu0 %v704
    %v706 = vpop.f32.mrf.mxu0
    %v707 = vadd.f32 %v644, %v706
    %v708 = vand.u32 %v95, 4294901760
    %v709 = vsub.f32 %v95, %v708
    %v710 = vand.u32 %v709, 4294901760
    %711 = vmatmul.f32.gmra.mxu0 %v710
    %v712 = vpop.f32.mrf.mxu0
    %v713 = vadd.f32 %v649, %v712
    %v714 = vand.u32 %v98, 4294901760
    %v715 = vsub.f32 %v98, %v714
    %v716 = vand.u32 %v715, 4294901760
    %717 = vmatmul.f32.gmra.mxu0 %v716
    %v718 = vpop.f32.mrf.mxu0
    %v719 = vadd.f32 %v654, %v718
    %v720 = vand.u32 %v101, 4294901760
    %v721 = vsub.f32 %v101, %v720
    %v722 = vand.u32 %v721, 4294901760
    %723 = vmatmul.f32.gmra.mxu0 %v722
    %v724 = vpop.f32.mrf.mxu0
    %v725 = vadd.f32 %v659, %v724
    %726 = vdwg.mxu0
    %727 = vmatpush.msra.mxu0 0.0
    %728 = vmatpush.msra.mxu0 0.0
    %729 = vmatpush.msra.mxu0 0.0
    %730 = vmatpush.msra.mxu0 0.0
    %731 = vmatpush.msra.mxu0 0.0
    %732 = vmatpush.msra.mxu0 0.0
    %733 = vmatpush.msra.mxu0 0.0
    %734 = vmatpush.msra.mxu0 0.0
    %735 = vmatpush.msra.mxu0 0.0
    %736 = vmatpush.msra.mxu0 0.0
    %737 = vmatpush.msra.mxu0 0.0
    %738 = vmatpush.msra.mxu0 0.0
    %739 = vmatpush.msra.mxu0 0.0
    %740 = vmatpush.msra.mxu0 0.0
    %741 = vmatpush.msra.mxu0 0.0
    %v742 = vand.u32 %v76, 4294901760
    %v743 = vsub.f32 %v76, %v742
    %v744 = vand.u32 %v743, 4294901760
    %745 = vmatpush.msra.mxu0 %v744
    %v746 = vand.u32 %v80, 4294901760
    %747 = vmatmul.f32.gmra.mxu0 %v746
    %v748 = vpop.f32.mrf.mxu0
    %v749 = vadd.f32 %v683, %v748
    %v750 = vand.u32 %v83, 4294901760
    %751 = vmatmul.f32.gmra.mxu0 %v750
    %v752 = vpop.f32.mrf.mxu0
    %v753 = vadd.f32 %v689, %v752
    %v754 = vand.u32 %v86, 4294901760
    %755 = vmatmul.f32.gmra.mxu0 %v754
    %v756 = vpop.f32.mrf.mxu0
    %v757 = vadd.f32 %v695, %v756
    %v758 = vand.u32 %v89, 4294901760
    %759 = vmatmul.f32.gmra.mxu0 %v758
    %v760 = vpop.f32.mrf.mxu0
    %v761 = vadd.f32 %v701, %v760
    %v762 = vand.u32 %v92, 4294901760
    %763 = vmatmul.f32.gmra.mxu0 %v762
    %v764 = vpop.f32.mrf.mxu0
    %v765 = vadd.f32 %v707, %v764
    %v766 = vand.u32 %v95, 4294901760
    %767 = vmatmul.f32.gmra.mxu0 %v766
    %v768 = vpop.f32.mrf.mxu0
    %v769 = vadd.f32 %v713, %v768
    %v770 = vand.u32 %v98, 4294901760
    %771 = vmatmul.f32.gmra.mxu0 %v770
    %v772 = vpop.f32.mrf.mxu0
    %v773 = vadd.f32 %v719, %v772
    %v774 = vand.u32 %v101, 4294901760
    %775 = vmatmul.f32.gmra.mxu0 %v774
    %v776 = vpop.f32.mrf.mxu0
    %v777 = vadd.f32 %v725, %v776
    %778 = vdwg.mxu0
    %779 = vmatpush.msra.mxu0 0.0
    %780 = vmatpush.msra.mxu0 0.0
    %781 = vmatpush.msra.mxu0 0.0
    %782 = vmatpush.msra.mxu0 0.0
    %783 = vmatpush.msra.mxu0 0.0
    %784 = vmatpush.msra.mxu0 0.0
    %785 = vmatpush.msra.mxu0 0.0
    %786 = vmatpush.msra.mxu0 0.0
    %787 = vmatpush.msra.mxu0 0.0
    %788 = vmatpush.msra.mxu0 0.0
    %789 = vmatpush.msra.mxu0 0.0
    %790 = vmatpush.msra.mxu0 0.0
    %791 = vmatpush.msra.mxu0 0.0
    %792 = vmatpush.msra.mxu0 0.0
    %793 = vmatpush.msra.mxu0 0.0
    %v794 = vand.u32 %v76, 4294901760
    %795 = vmatpush.msra.mxu0 %v794
    %v796 = vand.u32 %v80, 4294901760
    %797 = vmatmul.f32.gmra.mxu0 %v796
    %v798 = vpop.f32.mrf.mxu0
    %v799 = vadd.f32 %v749, %v798
    %v800 = vand.u32 %v83, 4294901760
    %801 = vmatmul.f32.gmra.mxu0 %v800
    %v802 = vpop.f32.mrf.mxu0
    %v803 = vadd.f32 %v753, %v802
    %v804 = vand.u32 %v86, 4294901760
    %805 = vmatmul.f32.gmra.mxu0 %v804
    %v806 = vpop.f32.mrf.mxu0
    %v807 = vadd.f32 %v757, %v806
    %v808 = vand.u32 %v89, 4294901760
    %809 = vmatmul.f32.gmra.mxu0 %v808
    %v810 = vpop.f32.mrf.mxu0
    %v811 = vadd.f32 %v761, %v810
    %v812 = vand.u32 %v92, 4294901760
    %813 = vmatmul.f32.gmra.mxu0 %v812
    %v814 = vpop.f32.mrf.mxu0
    %v815 = vadd.f32 %v765, %v814
    %v816 = vand.u32 %v95, 4294901760
    %817 = vmatmul.f32.gmra.mxu0 %v816
    %v818 = vpop.f32.mrf.mxu0
    %v819 = vadd.f32 %v769, %v818
    %v820 = vand.u32 %v98, 4294901760
    %821 = vmatmul.f32.gmra.mxu0 %v820
    %v822 = vpop.f32.mrf.mxu0
    %v823 = vadd.f32 %v773, %v822
    %v824 = vand.u32 %v101, 4294901760
    %825 = vmatmul.f32.gmra.mxu0 %v824
    %v826 = vpop.f32.mrf.mxu0
    %v827 = vadd.f32 %v777, %v826
    %828 = vdwg.mxu0
    %829 = vmatpush.msra.mxu0 0.0
    %830 = vmatpush.msra.mxu0 0.0
    %831 = vmatpush.msra.mxu0 0.0
    %832 = vmatpush.msra.mxu0 0.0
    %833 = vmatpush.msra.mxu0 0.0
    %834 = vmatpush.msra.mxu0 0.0
    %835 = vmatpush.msra.mxu0 0.0
    %836 = vmatpush.msra.mxu0 0.0
    %837 = vmatpush.msra.mxu0 0.0
    %838 = vmatpush.msra.mxu0 0.0
    %839 = vmatpush.msra.mxu0 0.0
    %840 = vmatpush.msra.mxu0 0.0
    %841 = vmatpush.msra.mxu0 0.0
    %842 = vmatpush.msra.mxu0 0.0
    %843 = vmatpush.msra.mxu0 0.0
    %v844 = vand.u32 %v77, 4294901760
    %845 = vmatpush.msra.mxu0 %v844
    %v846 = vand.u32 %v80, 4294901760
    %v847 = vsub.f32 %v80, %v846
    %v848 = vand.u32 %v847, 4294901760
    %v849 = vsub.f32 %v847, %v848
    %v850 = vand.u32 %v849, 4294901760
    %851 = vmatmul.f32.gmra.mxu0 %v850
    %v852 = vpop.f32.mrf.mxu0
    %v853 = vadd.f32 0.0, %v852
    %v854 = vand.u32 %v83, 4294901760
    %v855 = vsub.f32 %v83, %v854
    %v856 = vand.u32 %v855, 4294901760
    %v857 = vsub.f32 %v855, %v856
    %v858 = vand.u32 %v857, 4294901760
    %859 = vmatmul.f32.gmra.mxu0 %v858
    %v860 = vpop.f32.mrf.mxu0
    %v861 = vadd.f32 0.0, %v860
    %v862 = vand.u32 %v86, 4294901760
    %v863 = vsub.f32 %v86, %v862
    %v864 = vand.u32 %v863, 4294901760
    %v865 = vsub.f32 %v863, %v864
    %v866 = vand.u32 %v865, 4294901760
    %867 = vmatmul.f32.gmra.mxu0 %v866
    %v868 = vpop.f32.mrf.mxu0
    %v869 = vadd.f32 0.0, %v868
    %v870 = vand.u32 %v89, 4294901760
    %v871 = vsub.f32 %v89, %v870
    %v872 = vand.u32 %v871, 4294901760
    %v873 = vsub.f32 %v871, %v872
    %v874 = vand.u32 %v873, 4294901760
    %875 = vmatmul.f32.gmra.mxu0 %v874
    %v876 = vpop.f32.mrf.mxu0
    %v877 = vadd.f32 0.0, %v876
    %v878 = vand.u32 %v92, 4294901760
    %v879 = vsub.f32 %v92, %v878
    %v880 = vand.u32 %v879, 4294901760
    %v881 = vsub.f32 %v879, %v880
    %v882 = vand.u32 %v881, 4294901760
    %883 = vmatmul.f32.gmra.mxu0 %v882
    %v884 = vpop.f32.mrf.mxu0
    %v885 = vadd.f32 0.0, %v884
    %v886 = vand.u32 %v95, 4294901760
    %v887 = vsub.f32 %v95, %v886
    %v888 = vand.u32 %v887, 4294901760
    %v889 = vsub.f32 %v887, %v888
    %v890 = vand.u32 %v889, 4294901760
    %891 = vmatmul.f32.gmra.mxu0 %v890
    %v892 = vpop.f32.mrf.mxu0
    %v893 = vadd.f32 0.0, %v892
    %v894 = vand.u32 %v98, 4294901760
    %v895 = vsub.f32 %v98, %v894
    %v896 = vand.u32 %v895, 4294901760
    %v897 = vsub.f32 %v895, %v896
    %v898 = vand.u32 %v897, 4294901760
    %899 = vmatmul.f32.gmra.mxu0 %v898
    %v900 = vpop.f32.mrf.mxu0
    %v901 = vadd.f32 0.0, %v900
    %v902 = vand.u32 %v101, 4294901760
    %v903 = vsub.f32 %v101, %v902
    %v904 = vand.u32 %v903, 4294901760
    %v905 = vsub.f32 %v903, %v904
    %v906 = vand.u32 %v905, 4294901760
    %907 = vmatmul.f32.gmra.mxu0 %v906
    %v908 = vpop.f32.mrf.mxu0
    %v909 = vadd.f32 0.0, %v908
    %910 = vdwg.mxu0
    %911 = vmatpush.msra.mxu0 0.0
    %912 = vmatpush.msra.mxu0 0.0
    %913 = vmatpush.msra.mxu0 0.0
    %914 = vmatpush.msra.mxu0 0.0
    %915 = vmatpush.msra.mxu0 0.0
    %916 = vmatpush.msra.mxu0 0.0
    %917 = vmatpush.msra.mxu0 0.0
    %918 = vmatpush.msra.mxu0 0.0
    %919 = vmatpush.msra.mxu0 0.0
    %920 = vmatpush.msra.mxu0 0.0
    %921 = vmatpush.msra.mxu0 0.0
    %922 = vmatpush.msra.mxu0 0.0
    %923 = vmatpush.msra.mxu0 0.0
    %924 = vmatpush.msra.mxu0 0.0
    %925 = vmatpush.msra.mxu0 0.0
    %v926 = vand.u32 %v77, 4294901760
    %v927 = vsub.f32 %v77, %v926
    %v928 = vand.u32 %v927, 4294901760
    %v929 = vsub.f32 %v927, %v928
    %v930 = vand.u32 %v929, 4294901760
    %931 = vmatpush.msra.mxu0 %v930
    %v932 = vand.u32 %v80, 4294901760
    %933 = vmatmul.f32.gmra.mxu0 %v932
    %v934 = vpop.f32.mrf.mxu0
    %v935 = vadd.f32 %v853, %v934
    %v936 = vand.u32 %v83, 4294901760
    %937 = vmatmul.f32.gmra.mxu0 %v936
    %v938 = vpop.f32.mrf.mxu0
    %v939 = vadd.f32 %v861, %v938
    %v940 = vand.u32 %v86, 4294901760
    %941 = vmatmul.f32.gmra.mxu0 %v940
    %v942 = vpop.f32.mrf.mxu0
    %v943 = vadd.f32 %v869, %v942
    %v944 = vand.u32 %v89, 4294901760
    %945 = vmatmul.f32.gmra.mxu0 %v944
    %v946 = vpop.f32.mrf.mxu0
    %v947 = vadd.f32 %v877, %v946
    %v948 = vand.u32 %v92, 4294901760
    %949 = vmatmul.f32.gmra.mxu0 %v948
    %v950 = vpop.f32.mrf.mxu0
    %v951 = vadd.f32 %v885, %v950
    %v952 = vand.u32 %v95, 4294901760
    %953 = vmatmul.f32.gmra.mxu0 %v952
    %v954 = vpop.f32.mrf.mxu0
    %v955 = vadd.f32 %v893, %v954
    %v956 = vand.u32 %v98, 4294901760
    %957 = vmatmul.f32.gmra.mxu0 %v956
    %v958 = vpop.f32.mrf.mxu0
    %v959 = vadd.f32 %v901, %v958
    %v960 = vand.u32 %v101, 4294901760
    %961 = vmatmul.f32.gmra.mxu0 %v960
    %v962 = vpop.f32.mrf.mxu0
    %v963 = vadd.f32 %v909, %v962
    %964 = vdwg.mxu0
    %965 = vmatpush.msra.mxu0 0.0
    %966 = vmatpush.msra.mxu0 0.0
    %967 = vmatpush.msra.mxu0 0.0
    %968 = vmatpush.msra.mxu0 0.0
    %969 = vmatpush.msra.mxu0 0.0
    %970 = vmatpush.msra.mxu0 0.0
    %971 = vmatpush.msra.mxu0 0.0
    %972 = vmatpush.msra.mxu0 0.0
    %973 = vmatpush.msra.mxu0 0.0
    %974 = vmatpush.msra.mxu0 0.0
    %975 = vmatpush.msra.mxu0 0.0
    %976 = vmatpush.msra.mxu0 0.0
    %977 = vmatpush.msra.mxu0 0.0
    %978 = vmatpush.msra.mxu0 0.0
    %979 = vmatpush.msra.mxu0 0.0
    %v980 = vand.u32 %v77, 4294901760
    %v981 = vsub.f32 %v77, %v980
    %982 = vmatpush.msra.mxu0 %v981
    %v983 = vand.u32 %v80, 4294901760
    %v984 = vsub.f32 %v80, %v983
    %985 = vmatmul.f32.gmra.mxu0 %v984
    %v986 = vpop.f32.mrf.mxu0
    %v987 = vadd.f32 %v935, %v986
    %v988 = vand.u32 %v83, 4294901760
    %v989 = vsub.f32 %v83, %v988
    %990 = vmatmul.f32.gmra.mxu0 %v989
    %v991 = vpop.f32.mrf.mxu0
    %v992 = vadd.f32 %v939, %v991
    %v993 = vand.u32 %v86, 4294901760
    %v994 = vsub.f32 %v86, %v993
    %995 = vmatmul.f32.gmra.mxu0 %v994
    %v996 = vpop.f32.mrf.mxu0
    %v997 = vadd.f32 %v943, %v996
    %v998 = vand.u32 %v89, 4294901760
    %v999 = vsub.f32 %v89, %v998
    %1000 = vmatmul.f32.gmra.mxu0 %v999
    %v1001 = vpop.f32.mrf.mxu0
    %v1002 = vadd.f32 %v947, %v1001
    %v1003 = vand.u32 %v92, 4294901760
    %v1004 = vsub.f32 %v92, %v1003
    %1005 = vmatmul.f32.gmra.mxu0 %v1004
    %v1006 = vpop.f32.mrf.mxu0
    %v1007 = vadd.f32 %v951, %v1006
    %v1008 = vand.u32 %v95, 4294901760
    %v1009 = vsub.f32 %v95, %v1008
    %1010 = vmatmul.f32.gmra.mxu0 %v1009
    %v1011 = vpop.f32.mrf.mxu0
    %v1012 = vadd.f32 %v955, %v1011
    %v1013 = vand.u32 %v98, 4294901760
    %v1014 = vsub.f32 %v98, %v1013
    %1015 = vmatmul.f32.gmra.mxu0 %v1014
    %v1016 = vpop.f32.mrf.mxu0
    %v1017 = vadd.f32 %v959, %v1016
    %v1018 = vand.u32 %v101, 4294901760
    %v1019 = vsub.f32 %v101, %v1018
    %1020 = vmatmul.f32.gmra.mxu0 %v1019
    %v1021 = vpop.f32.mrf.mxu0
    %v1022 = vadd.f32 %v963, %v1021
    %1023 = vdwg.mxu0
    %1024 = vmatpush.msra.mxu0 0.0
    %1025 = vmatpush.msra.mxu0 0.0
    %1026 = vmatpush.msra.mxu0 0.0
    %1027 = vmatpush.msra.mxu0 0.0
    %1028 = vmatpush.msra.mxu0 0.0
    %1029 = vmatpush.msra.mxu0 0.0
    %1030 = vmatpush.msra.mxu0 0.0
    %1031 = vmatpush.msra.mxu0 0.0
    %1032 = vmatpush.msra.mxu0 0.0
    %1033 = vmatpush.msra.mxu0 0.0
    %1034 = vmatpush.msra.mxu0 0.0
    %1035 = vmatpush.msra.mxu0 0.0
    %1036 = vmatpush.msra.mxu0 0.0
    %1037 = vmatpush.msra.mxu0 0.0
    %1038 = vmatpush.msra.mxu0 0.0
    %v1039 = vand.u32 %v77, 4294901760
    %1040 = vmatpush.msra.mxu0 %v1039
    %v1041 = vand.u32 %v80, 4294901760
    %v1042 = vsub.f32 %v80, %v1041
    %v1043 = vand.u32 %v1042, 4294901760
    %1044 = vmatmul.f32.gmra.mxu0 %v1043
    %v1045 = vpop.f32.mrf.mxu0
    %v1046 = vadd.f32 %v987, %v1045
    %v1047 = vand.u32 %v83, 4294901760
    %v1048 = vsub.f32 %v83, %v1047
    %v1049 = vand.u32 %v1048, 4294901760
    %1050 = vmatmul.f32.gmra.mxu0 %v1049
    %v1051 = vpop.f32.mrf.mxu0
    %v1052 = vadd.f32 %v992, %v1051
    %v1053 = vand.u32 %v86, 4294901760
    %v1054 = vsub.f32 %v86, %v1053
    %v1055 = vand.u32 %v1054, 4294901760
    %1056 = vmatmul.f32.gmra.mxu0 %v1055
    %v1057 = vpop.f32.mrf.mxu0
    %v1058 = vadd.f32 %v997, %v1057
    %v1059 = vand.u32 %v89, 4294901760
    %v1060 = vsub.f32 %v89, %v1059
    %v1061 = vand.u32 %v1060, 4294901760
    %1062 = vmatmul.f32.gmra.mxu0 %v1061
    %v1063 = vpop.f32.mrf.mxu0
    %v1064 = vadd.f32 %v1002, %v1063
    %v1065 = vand.u32 %v92, 4294901760
    %v1066 = vsub.f32 %v92, %v1065
    %v1067 = vand.u32 %v1066, 4294901760
    %1068 = vmatmul.f32.gmra.mxu0 %v1067
    %v1069 = vpop.f32.mrf.mxu0
    %v1070 = vadd.f32 %v1007, %v1069
    %v1071 = vand.u32 %v95, 4294901760
    %v1072 = vsub.f32 %v95, %v1071
    %v1073 = vand.u32 %v1072, 4294901760
    %1074 = vmatmul.f32.gmra.mxu0 %v1073
    %v1075 = vpop.f32.mrf.mxu0
    %v1076 = vadd.f32 %v1012, %v1075
    %v1077 = vand.u32 %v98, 4294901760
    %v1078 = vsub.f32 %v98, %v1077
    %v1079 = vand.u32 %v1078, 4294901760
    %1080 = vmatmul.f32.gmra.mxu0 %v1079
    %v1081 = vpop.f32.mrf.mxu0
    %v1082 = vadd.f32 %v1017, %v1081
    %v1083 = vand.u32 %v101, 4294901760
    %v1084 = vsub.f32 %v101, %v1083
    %v1085 = vand.u32 %v1084, 4294901760
    %1086 = vmatmul.f32.gmra.mxu0 %v1085
    %v1087 = vpop.f32.mrf.mxu0
    %v1088 = vadd.f32 %v1022, %v1087
    %1089 = vdwg.mxu0
    %1090 = vmatpush.msra.mxu0 0.0
    %1091 = vmatpush.msra.mxu0 0.0
    %1092 = vmatpush.msra.mxu0 0.0
    %1093 = vmatpush.msra.mxu0 0.0
    %1094 = vmatpush.msra.mxu0 0.0
    %1095 = vmatpush.msra.mxu0 0.0
    %1096 = vmatpush.msra.mxu0 0.0
    %1097 = vmatpush.msra.mxu0 0.0
    %1098 = vmatpush.msra.mxu0 0.0
    %1099 = vmatpush.msra.mxu0 0.0
    %1100 = vmatpush.msra.mxu0 0.0
    %1101 = vmatpush.msra.mxu0 0.0
    %1102 = vmatpush.msra.mxu0 0.0
    %1103 = vmatpush.msra.mxu0 0.0
    %1104 = vmatpush.msra.mxu0 0.0
    %v1105 = vand.u32 %v77, 4294901760
    %v1106 = vsub.f32 %v77, %v1105
    %v1107 = vand.u32 %v1106, 4294901760
    %1108 = vmatpush.msra.mxu0 %v1107
    %v1109 = vand.u32 %v80, 4294901760
    %1110 = vmatmul.f32.gmra.mxu0 %v1109
    %v1111 = vpop.f32.mrf.mxu0
    %v1112 = vadd.f32 %v1046, %v1111
    %v1113 = vand.u32 %v83, 4294901760
    %1114 = vmatmul.f32.gmra.mxu0 %v1113
    %v1115 = vpop.f32.mrf.mxu0
    %v1116 = vadd.f32 %v1052, %v1115
    %v1117 = vand.u32 %v86, 4294901760
    %1118 = vmatmul.f32.gmra.mxu0 %v1117
    %v1119 = vpop.f32.mrf.mxu0
    %v1120 = vadd.f32 %v1058, %v1119
    %v1121 = vand.u32 %v89, 4294901760
    %1122 = vmatmul.f32.gmra.mxu0 %v1121
    %v1123 = vpop.f32.mrf.mxu0
    %v1124 = vadd.f32 %v1064, %v1123
    %v1125 = vand.u32 %v92, 4294901760
    %1126 = vmatmul.f32.gmra.mxu0 %v1125
    %v1127 = vpop.f32.mrf.mxu0
    %v1128 = vadd.f32 %v1070, %v1127
    %v1129 = vand.u32 %v95, 4294901760
    %1130 = vmatmul.f32.gmra.mxu0 %v1129
    %v1131 = vpop.f32.mrf.mxu0
    %v1132 = vadd.f32 %v1076, %v1131
    %v1133 = vand.u32 %v98, 4294901760
    %1134 = vmatmul.f32.gmra.mxu0 %v1133
    %v1135 = vpop.f32.mrf.mxu0
    %v1136 = vadd.f32 %v1082, %v1135
    %v1137 = vand.u32 %v101, 4294901760
    %1138 = vmatmul.f32.gmra.mxu0 %v1137
    %v1139 = vpop.f32.mrf.mxu0
    %v1140 = vadd.f32 %v1088, %v1139
    %1141 = vdwg.mxu0
    %1142 = vmatpush.msra.mxu0 0.0
    %1143 = vmatpush.msra.mxu0 0.0
    %1144 = vmatpush.msra.mxu0 0.0
    %1145 = vmatpush.msra.mxu0 0.0
    %1146 = vmatpush.msra.mxu0 0.0
    %1147 = vmatpush.msra.mxu0 0.0
    %1148 = vmatpush.msra.mxu0 0.0
    %1149 = vmatpush.msra.mxu0 0.0
    %1150 = vmatpush.msra.mxu0 0.0
    %1151 = vmatpush.msra.mxu0 0.0
    %1152 = vmatpush.msra.mxu0 0.0
    %1153 = vmatpush.msra.mxu0 0.0
    %1154 = vmatpush.msra.mxu0 0.0
    %1155 = vmatpush.msra.mxu0 0.0
    %1156 = vmatpush.msra.mxu0 0.0
    %v1157 = vand.u32 %v77, 4294901760
    %1158 = vmatpush.msra.mxu0 %v1157
    %v1159 = vand.u32 %v80, 4294901760
    %1160 = vmatmul.f32.gmra.mxu0 %v1159
    %v1161 = vpop.f32.mrf.mxu0
    %v1162 = vadd.f32 %v1112, %v1161
    %v1163 = vand.u32 %v83, 4294901760
    %1164 = vmatmul.f32.gmra.mxu0 %v1163
    %v1165 = vpop.f32.mrf.mxu0
    %v1166 = vadd.f32 %v1116, %v1165
    %v1167 = vand.u32 %v86, 4294901760
    %1168 = vmatmul.f32.gmra.mxu0 %v1167
    %v1169 = vpop.f32.mrf.mxu0
    %v1170 = vadd.f32 %v1120, %v1169
    %v1171 = vand.u32 %v89, 4294901760
    %1172 = vmatmul.f32.gmra.mxu0 %v1171
    %v1173 = vpop.f32.mrf.mxu0
    %v1174 = vadd.f32 %v1124, %v1173
    %v1175 = vand.u32 %v92, 4294901760
    %1176 = vmatmul.f32.gmra.mxu0 %v1175
    %v1177 = vpop.f32.mrf.mxu0
    %v1178 = vadd.f32 %v1128, %v1177
    %v1179 = vand.u32 %v95, 4294901760
    %1180 = vmatmul.f32.gmra.mxu0 %v1179
    %v1181 = vpop.f32.mrf.mxu0
    %v1182 = vadd.f32 %v1132, %v1181
    %v1183 = vand.u32 %v98, 4294901760
    %1184 = vmatmul.f32.gmra.mxu0 %v1183
    %v1185 = vpop.f32.mrf.mxu0
    %v1186 = vadd.f32 %v1136, %v1185
    %v1187 = vand.u32 %v101, 4294901760
    %1188 = vmatmul.f32.gmra.mxu0 %v1187
    %v1189 = vpop.f32.mrf.mxu0
    %v1190 = vadd.f32 %v1140, %v1189
    %1191 = vdwg.mxu0
    %v1192 = vadd.f32 %v43, %v436
    %v1193 = vadd.f32 %v44, %v799
    %v1194 = vadd.f32 %v45, %v1162
    %v1195 = vadd.f32 %v46, %v440
    %v1196 = vadd.f32 %v47, %v803
    %v1197 = vadd.f32 %v48, %v1166
    %v1198 = vadd.f32 %v49, %v444
    %v1199 = vadd.f32 %v50, %v807
    %v1200 = vadd.f32 %v51, %v1170
    %v1201 = vadd.f32 %v52, %v448
    %v1202 = vadd.f32 %v53, %v811
    %v1203 = vadd.f32 %v54, %v1174
    %v1204 = vadd.f32 %v55, %v452
    %v1205 = vadd.f32 %v56, %v815
    %v1206 = vadd.f32 %v57, %v1178
    %v1207 = vadd.f32 %v58, %v456
    %v1208 = vadd.f32 %v59, %v819
    %v1209 = vadd.f32 %v60, %v1182
    %v1210 = vadd.f32 %v61, %v460
    %v1211 = vadd.f32 %v62, %v823
    %v1212 = vadd.f32 %v63, %v1186
    %v1213 = vadd.f32 %v64, %v464
    %v1214 = vadd.f32 %v65, %v827
    %v1215 = vadd.f32 %v66, %v1190
    %1216 = vst [vmem:[#allocation2] sm:$0xff] %v1192
    %1217 = vst [vmem:[#allocation2 + $0x8] sm:$0xff] %v1193
    %1218 = vst [vmem:[#allocation2 + $0x10] sm:$0xff] %v1194
    %1219 = vst [vmem:[#allocation2 + $0x18] sm:$0xff] %v1195
    %1220 = vst [vmem:[#allocation2 + $0x20] sm:$0xff] %v1196
    %1221 = vst [vmem:[#allocation2 + $0x28] sm:$0xff] %v1197
    %1222 = vst [vmem:[#allocation2 + $0x30] sm:$0xff] %v1198
    %1223 = vst [vmem:[#allocation2 + $0x38] sm:$0xff] %v1199
    %1224 = vst [vmem:[#allocation2 + $0x40] sm:$0xff] %v1200
    %1225 = vst [vmem:[#allocation2 + $0x48] sm:$0xff] %v1201
    %1226 = vst [vmem:[#allocation2 + $0x50] sm:$0xff] %v1202
    %1227 = vst [vmem:[#allocation2 + $0x58] sm:$0xff] %v1203
    %1228 = vst [vmem:[#allocation2 + $0x60] sm:$0xff] %v1204
    %1229 = vst [vmem:[#allocation2 + $0x68] sm:$0xff] %v1205
    %1230 = vst [vmem:[#allocation2 + $0x70] sm:$0xff] %v1206
    %1231 = vst [vmem:[#allocation2 + $0x78] sm:$0xff] %v1207
    %1232 = vst [vmem:[#allocation2 + $0x80] sm:$0xff] %v1208
    %1233 = vst [vmem:[#allocation2 + $0x88] sm:$0xff] %v1209
    %1234 = vst [vmem:[#allocation2 + $0x90] sm:$0xff] %v1210
    %1235 = vst [vmem:[#allocation2 + $0x98] sm:$0xff] %v1211
    %1236 = vst [vmem:[#allocation2 + $0xa0] sm:$0xff] %v1212
    %1237 = vst [vmem:[#allocation2 + $0xa8] sm:$0xff] %v1213
    %1238 = vst [vmem:[#allocation2 + $0xb0] sm:$0xff] %v1214
    %1239 = vst [vmem:[#allocation2 + $0xb8] sm:$0xff] %v1215
    // Predicated region
    $region18: #{tpu_custom_call.1} parent=1 // pred_check
      %p1240 = pneg %p15
    $region19: #{tpu_custom_call.1} parent=1 // pred_check_branch
      %1242 = sbr.rel (%p1240) target = $region21
    $region20: #{tpu_custom_call.1} parent=1 // pred_region
      %v1243 = vld [vmem:[#allocation2] sm:$0xff]
      %v1244 = vld [vmem:[#allocation2 + $0x8] sm:$0xff]
      %v1245 = vld [vmem:[#allocation2 + $0x10] sm:$0xff]
      %v1246 = vld [vmem:[#allocation2 + $0x18] sm:$0xff]
      %v1247 = vld [vmem:[#allocation2 + $0x20] sm:$0xff]
      %v1248 = vld [vmem:[#allocation2 + $0x28] sm:$0xff]
      %v1249 = vld [vmem:[#allocation2 + $0x30] sm:$0xff]
      %v1250 = vld [vmem:[#allocation2 + $0x38] sm:$0xff]
      %v1251 = vld [vmem:[#allocation2 + $0x40] sm:$0xff]
      %v1252 = vld [vmem:[#allocation2 + $0x48] sm:$0xff]
      %v1253 = vld [vmem:[#allocation2 + $0x50] sm:$0xff]
      %v1254 = vld [vmem:[#allocation2 + $0x58] sm:$0xff]
      %v1255 = vld [vmem:[#allocation2 + $0x60] sm:$0xff]
      %v1256 = vld [vmem:[#allocation2 + $0x68] sm:$0xff]
      %v1257 = vld [vmem:[#allocation2 + $0x70] sm:$0xff]
      %v1258 = vld [vmem:[#allocation2 + $0x78] sm:$0xff]
      %v1259 = vld [vmem:[#allocation2 + $0x80] sm:$0xff]
      %v1260 = vld [vmem:[#allocation2 + $0x88] sm:$0xff]
      %v1261 = vld [vmem:[#allocation2 + $0x90] sm:$0xff]
      %v1262 = vld [vmem:[#allocation2 + $0x98] sm:$0xff]
      %v1263 = vld [vmem:[#allocation2 + $0xa0] sm:$0xff]
      %v1264 = vld [vmem:[#allocation2 + $0xa8] sm:$0xff]
      %v1265 = vld [vmem:[#allocation2 + $0xb0] sm:$0xff]
      %v1266 = vld [vmem:[#allocation2 + $0xb8] sm:$0xff]
      %v1267 = vld [vmem:[%s2] sm:$0x7]
      %v1269 = vperm.slane %v1267, 0
      %v1270 = vperm.slane %v1267, 1
      %v1271 = vperm.slane %v1267, 2
      %v1275 = vadd.f32 %v1243, %v1269
      %v1276 = vadd.f32 %v1244, %v1270
      %v1277 = vadd.f32 %v1245, %v1271
      %v1278 = vadd.f32 %v1246, %v1269
      %v1279 = vadd.f32 %v1247, %v1270
      %v1280 = vadd.f32 %v1248, %v1271
      %v1281 = vadd.f32 %v1249, %v1269
      %v1282 = vadd.f32 %v1250, %v1270
      %v1283 = vadd.f32 %v1251, %v1271
      %v1284 = vadd.f32 %v1252, %v1269
      %v1285 = vadd.f32 %v1253, %v1270
      %v1286 = vadd.f32 %v1254, %v1271
      %v1287 = vadd.f32 %v1255, %v1269
      %v1288 = vadd.f32 %v1256, %v1270
      %v1289 = vadd.f32 %v1257, %v1271
      %v1290 = vadd.f32 %v1258, %v1269
      %v1291 = vadd.f32 %v1259, %v1270
      %v1292 = vadd.f32 %v1260, %v1271
      %v1293 = vadd.f32 %v1261, %v1269
      %v1294 = vadd.f32 %v1262, %v1270
      %v1295 = vadd.f32 %v1263, %v1271
      %v1296 = vadd.f32 %v1264, %v1269
      %v1297 = vadd.f32 %v1265, %v1270
      %v1298 = vadd.f32 %v1266, %v1271
      %1299 = vst [vmem:[#allocation3] sm:$0xff] %v1275
      %1300 = vst [vmem:[#allocation3 + $0x8] sm:$0xff] %v1276
      %1301 = vst [vmem:[#allocation3 + $0x10] sm:$0xff] %v1277
      %1302 = vst [vmem:[#allocation3 + $0x18] sm:$0xff] %v1278
      %1303 = vst [vmem:[#allocation3 + $0x20] sm:$0xff] %v1279
      %1304 = vst [vmem:[#allocation3 + $0x28] sm:$0xff] %v1280
      %1305 = vst [vmem:[#allocation3 + $0x30] sm:$0xff] %v1281
      %1306 = vst [vmem:[#allocation3 + $0x38] sm:$0xff] %v1282
      %1307 = vst [vmem:[#allocation3 + $0x40] sm:$0xff] %v1283
      %1308 = vst [vmem:[#allocation3 + $0x48] sm:$0xff] %v1284
      %1309 = vst [vmem:[#allocation3 + $0x50] sm:$0xff] %v1285
      %1310 = vst [vmem:[#allocation3 + $0x58] sm:$0xff] %v1286
      %1311 = vst [vmem:[#allocation3 + $0x60] sm:$0xff] %v1287
      %1312 = vst [vmem:[#allocation3 + $0x68] sm:$0xff] %v1288
      %1313 = vst [vmem:[#allocation3 + $0x70] sm:$0xff] %v1289
      %1314 = vst [vmem:[#allocation3 + $0x78] sm:$0xff] %v1290
      %1315 = vst [vmem:[#allocation3 + $0x80] sm:$0xff] %v1291
      %1316 = vst [vmem:[#allocation3 + $0x88] sm:$0xff] %v1292
      %1317 = vst [vmem:[#allocation3 + $0x90] sm:$0xff] %v1293
      %1318 = vst [vmem:[#allocation3 + $0x98] sm:$0xff] %v1294
      %1319 = vst [vmem:[#allocation3 + $0xa0] sm:$0xff] %v1295
      %1320 = vst [vmem:[#allocation3 + $0xa8] sm:$0xff] %v1296
      %1321 = vst [vmem:[#allocation3 + $0xb0] sm:$0xff] %v1297
      %1322 = vst [vmem:[#allocation3 + $0xb8] sm:$0xff] %v1298
    $region21: #{tpu_custom_call.1} parent=1 // pred_fallthru
      _
    // Predicated region
    $region22: #{tpu_custom_call.1} parent=1 // pred_check
      _
    $region23: #{tpu_custom_call.1} parent=1 // pred_check_branch
      %1324 = sbr.rel (0) target = $region25
    $region24: #{tpu_custom_call.1} parent=1 // pred_region
      %1326 = vsyncadd [#allocation4], 0
      %s1327 = sshll.u32 [#allocation3], 4
      %s1328 = int_to_ptr.vmem [resolvable:$true] %s1327
      %s1329 = sshll.u32 %s3, 4
      %s1330 = int_to_ptr.hbm [resolvable:$true] %s1329
      %1335 = dma.vmem_to_hbm [thread:$0]  %s1328, 3072, %s1330, [#allocation4], 384, 384, 24
    $region25: #{tpu_custom_call.1} parent=1 // pred_fallthru
      _
    // Predicated region
    $region26: #{tpu_custom_call.1} parent=1 // pred_check
      _
    $region27: #{tpu_custom_call.1} parent=1 // pred_check_branch
      %1337 = sbr.rel (0) target = $region29
    $region28: #{tpu_custom_call.1} parent=1 // pred_region
      %1339 = dma.done [#allocation4], 3072
    $region29: #{tpu_custom_call.1} parent=1 // pred_fallthru
      _
    %1340 = vsyncpa [#allocation4], 1

</llo_original>
